<compile_context>
chip_gen: v7x
topology: tpu7x:2x2x1
jax: 0.10.0
libtpu: 0.0.40
codegen_flags: <defaults>
</compile_context>

<pallas_src>
import functools

import jax
import jax.numpy as jnp
from jax.experimental import pallas as pl
from jax.experimental.pallas import tpu as pltpu


def _round_up(v, m):
    return ((v + m - 1) // m) * m


def _fc_single_block_kernel(x_ref, w_ref, b_ref, o_ref):
    """Whole problem resident in VMEM: one matmul + bias, no grid machinery."""
    o_ref[...] = (
        jnp.dot(x_ref[...], w_ref[...], preferred_element_type=jnp.float32)
        + b_ref[...]
    ).astype(o_ref.dtype)


def _fc_tiled_kernel(x_ref, w_ref, b_ref, o_ref, acc_ref):
    """One (tm, tn) output tile; grid axis 2 reduces over K (innermost)."""
    k = pl.program_id(2)

    @pl.when(k == 0)
    def _():
        acc_ref[...] = jnp.zeros_like(acc_ref)

    acc_ref[...] += jnp.dot(
        x_ref[...], w_ref[...], preferred_element_type=jnp.float32
    )

    @pl.when(k == pl.num_programs(2) - 1)
    def _():
        # bias broadcast over the rows of the output tile, added in f32
        o_ref[...] = (acc_ref[...] + b_ref[...]).astype(o_ref.dtype)


@functools.partial(
    jax.jit, static_argnames=("tm", "tn", "tk", "single_block")
)
def fully_connected(x, w, b=None, *, tm=256, tn=512, tk=512,
                    single_block=None):
    """Y = x @ w + b via Pallas TPU kernels.

    x: (M, K), w: (K, N), b: (N,) or None.
    tm/tn/tk: tile sizes for the tiled path (capped / aligned automatically).
    single_block: force (True) / forbid (False) the single-block fast path;
                  None = auto based on problem size.
    """
    M, K = x.shape
    K2, N = w.shape
    assert K == K2, "inner dimensions must match"
    out_dtype = x.dtype

    if b is None:
        b_row = jnp.zeros((1, N), dtype=x.dtype)
    else:
        b_row = b.reshape(1, N).astype(x.dtype)

    # ---------------- small-problem fast path ----------------
    itemsize = jnp.dtype(x.dtype).itemsize
    total_bytes = (M * K + K * N + N + M * N) * itemsize
    use_single = (total_bytes <= (4 << 20)) if single_block is None else single_block

    if use_single:
        return pl.pallas_call(
            _fc_single_block_kernel,
            out_shape=jax.ShapeDtypeStruct((M, N), out_dtype),
            grid_spec=pltpu.PrefetchScalarGridSpec(
                num_scalar_prefetch=0,
                grid=(1,),
                in_specs=[
                    pl.BlockSpec((M, K), lambda i: (0, 0)),
                    pl.BlockSpec((K, N), lambda i: (0, 0)),
                    pl.BlockSpec((1, N), lambda i: (0, 0)),
                ],
                out_specs=pl.BlockSpec((M, N), lambda i: (0, 0)),
            ),
            compiler_params=pltpu.CompilerParams(
                dimension_semantics=("arbitrary",)
            ),
        )(x, w, b_row)

    # ---------------- tiled path: large, lane-dense, MXU-aligned tiles ------
    # Cap tiles at the (aligned) problem size; keep lane dims multiples of 128
    # and the sublane dim a multiple of 8.
    tm_e = min(tm, _round_up(M, 8))
    tn_e = min(tn, _round_up(N, 128))
    tk_e = min(tk, _round_up(K, 128))

    Mp = _round_up(M, tm_e)
    Np = _round_up(N, tn_e)
    Kp = _round_up(K, tk_e)

    # Zero-pad instead of asserting exact divisibility (zeros in K contribute
    # nothing to the dot product; padded M/N rows/cols are sliced off below).
    xp = x if (Mp == M and Kp == K) else jnp.pad(x, ((0, Mp - M), (0, Kp - K)))
    wp = w if (Kp == K and Np == N) else jnp.pad(w, ((0, Kp - K), (0, Np - N)))
    bp = b_row if Np == N else jnp.pad(b_row, ((0, 0), (0, Np - N)))

    out_p = pl.pallas_call(
        _fc_tiled_kernel,
        out_shape=jax.ShapeDtypeStruct((Mp, Np), out_dtype),
        grid_spec=pltpu.PrefetchScalarGridSpec(
            num_scalar_prefetch=0,
            grid=(Mp // tm_e, Np // tn_e, Kp // tk_e),
            in_specs=[
                pl.BlockSpec((tm_e, tk_e), lambda i, j, k: (i, k)),   # X tile
                pl.BlockSpec((tk_e, tn_e), lambda i, j, k: (k, j)),   # W tile
                pl.BlockSpec((1, tn_e), lambda i, j, k: (0, j)),      # bias
            ],
            out_specs=pl.BlockSpec((tm_e, tn_e), lambda i, j, k: (i, j)),
            scratch_shapes=[pltpu.VMEM((tm_e, tn_e), jnp.float32)],
        ),
        compiler_params=pltpu.CompilerParams(
            dimension_semantics=("parallel", "parallel", "arbitrary"),
            # headroom above the scoped default, still safe on v7x's 64 MiB
            vmem_limit_bytes=64 << 20,
        ),
    )(xp, wp, bp)

    if Mp == M and Np == N:
        return out_p
    return out_p[:M, :N]


if __name__ == "__main__":
    key = jax.random.PRNGKey(0)
    kx, kw, kb, kx2, kw2, kb2 = jax.random.split(key, 6)

    # ---- test 1: small demo shape (single-block fast path) -----------------
    batch, in_features, out_features = 16, 32, 128
    stdv = 1.0 / jnp.sqrt(jnp.float32(in_features))
    x = jax.random.normal(kx, (batch, in_features), dtype=jnp.float32)
    W = jax.random.uniform(kw, (in_features, out_features),
                           minval=-stdv, maxval=stdv, dtype=jnp.float32)
    b = jax.random.uniform(kb, (out_features,),
                           minval=-stdv, maxval=stdv, dtype=jnp.float32)

    y = jax.block_until_ready(fully_connected(x, W, b))
    y_ref = x @ W + b
    assert y.shape == (batch, out_features)
    assert jnp.allclose(y, y_ref, atol=1e-5, rtol=1e-5)

    # no-bias variant (module's bias=False)
    y_nb = jax.block_until_ready(fully_connected(x, W, None))
    assert jnp.allclose(y_nb, x @ W, atol=1e-5, rtol=1e-5)

    # ---- test 2: tiled path with non-divisible shape (padding + K loop) ----
    M2, K2, N2 = 200, 384, 250
    stdv2 = 1.0 / jnp.sqrt(jnp.float32(K2))
    x2 = jax.random.normal(kx2, (M2, K2), dtype=jnp.float32)
    W2 = jax.random.uniform(kw2, (K2, N2), minval=-stdv2, maxval=stdv2,
                            dtype=jnp.float32)
    b2 = jax.random.uniform(kb2, (N2,), minval=-stdv2, maxval=stdv2,
                            dtype=jnp.float32)

    y2 = jax.block_until_ready(
        fully_connected(x2, W2, b2, tm=128, tn=256, tk=128,
                        single_block=False))
    y2_ref = x2 @ W2 + b2
    assert y2.shape == (M2, N2)
    assert jnp.allclose(y2, y2_ref, atol=1e-4, rtol=1e-4)

    print("KERNEL_OK")
</pallas_src>

<mosaic_0001>
module attributes {stable_mosaic.version = 11 : i64} {
  func.func @_fc_single_block_kernel(%arg0: i32, %arg1: memref<16x32xf32, #tpu.memory_space<vmem>>, %arg2: memref<32x128xf32, #tpu.memory_space<vmem>>, %arg3: memref<1x128xf32, #tpu.memory_space<vmem>>, %arg4: memref<16x128xf32, #tpu.memory_space<vmem>>) attributes {dimension_semantics = [#tpu.dimension_semantics<arbitrary>], iteration_bounds = array<i64: 1>, scalar_prefetch = 0 : i64, scratch_operands = 0 : i64, tpu.core_type = #tpu.core_type<tc>, window_params = [{pipeline_mode = #tpu.pipeline_mode<synchronous>, transform_indices = @transform_0, window_bounds = array<i64: 16, 32>}, {pipeline_mode = #tpu.pipeline_mode<synchronous>, transform_indices = @transform_1, window_bounds = array<i64: 32, 128>}, {pipeline_mode = #tpu.pipeline_mode<synchronous>, transform_indices = @transform_2, window_bounds = array<i64: 1, 128>}, {pipeline_mode = #tpu.pipeline_mode<synchronous>, transform_indices = @transform_3, window_bounds = array<i64: 16, 128>}]} {
    %c0 = arith.constant 0 : index
    %c0_0 = arith.constant 0 : index
    %0 = vector.load %arg1[%c0, %c0_0] : memref<16x32xf32, #tpu.memory_space<vmem>>, vector<16x32xf32>
    %c0_1 = arith.constant 0 : index
    %c0_2 = arith.constant 0 : index
    %1 = vector.load %arg2[%c0_1, %c0_2] : memref<32x128xf32, #tpu.memory_space<vmem>>, vector<32x128xf32>
    %cst = arith.constant dense<0.000000e+00> : vector<16x128xf32>
    %2 = tpu.matmul %0, %1, %cst {dimension_numbers = #tpu.dot_dimension_numbers<[1], [0], [0], [1], [0, 0, 1, 1], [], []>} : vector<16x32xf32>, vector<32x128xf32>, vector<16x128xf32> -> vector<16x128xf32>
    %c0_3 = arith.constant 0 : index
    %c0_4 = arith.constant 0 : index
    %3 = vector.load %arg3[%c0_3, %c0_4] : memref<1x128xf32, #tpu.memory_space<vmem>>, vector<1x128xf32>
    %4 = vector.broadcast %3 : vector<1x128xf32> to vector<16x128xf32>
    %5 = arith.addf %2, %4 : vector<16x128xf32>
    %c0_5 = arith.constant 0 : index
    %c0_6 = arith.constant 0 : index
    %6 = vector.load %arg4[%c0_5, %c0_6] : memref<16x128xf32, #tpu.memory_space<vmem>>, vector<16x128xf32>
    tpu.vector_store %arg4[%c0_5, %c0_6], %5 {strides = array<i32>} : memref<16x128xf32, #tpu.memory_space<vmem>>, vector<16x128xf32>,
    return
  }
  func.func @transform_0(%arg0: i32) -> (i32, i32) {
    %c0_i32 = arith.constant 0 : i32
    %c0_i32_0 = arith.constant 0 : i32
    %c0_i32_1 = arith.constant 0 : i32
    return %c0_i32, %c0_i32_0 : i32, i32
  }
  func.func @transform_1(%arg0: i32) -> (i32, i32) {
    %c0_i32 = arith.constant 0 : i32
    %c0_i32_0 = arith.constant 0 : i32
    %c0_i32_1 = arith.constant 0 : i32
    return %c0_i32, %c0_i32_0 : i32, i32
  }
  func.func @transform_2(%arg0: i32) -> (i32, i32) {
    %c0_i32 = arith.constant 0 : i32
    %c0_i32_0 = arith.constant 0 : i32
    %c0_i32_1 = arith.constant 0 : i32
    return %c0_i32, %c0_i32_0 : i32, i32
  }
  func.func @transform_3(%arg0: i32) -> (i32, i32) {
    %c0_i32 = arith.constant 0 : i32
    %c0_i32_0 = arith.constant 0 : i32
    %c0_i32_1 = arith.constant 0 : i32
    return %c0_i32, %c0_i32_0 : i32, i32
  }
}

</mosaic_0001>

<llo_original>
// kernel: fully_connected.1
$region0: #{fully_connected.1}
  #allocation0 [shape = 'u32[]', space=smem, size = 0x4, offset = 0x4, fixed_abs, tag = 'smem constant byte address 0x4 - core index']
  #allocation1 [shape = 'u32[144,128]{1,0:T(1,128)}', space=vmem, size = 0x12000, scoped, tag = 'internal scratch']
  %s0 = inlined_call_operand.hbm [shape: f32[16,32], index: 0, kind: input, shape index: {}]
  %s1 = inlined_call_operand.hbm [shape: f32[32,128], index: 1, kind: input, shape index: {}]
  %s2 = inlined_call_operand.vmem [shape: f32[1,128], index: 2, kind: input, shape index: {}]
  %s3 = inlined_call_operand.hbm [shape: f32[16,128], index: 3, kind: output, shape index: {}]
  %s4 = sld [smem:[#allocation0]]
  $region30: #{fully_connected.1} parent=0
    _
  %s6 = ssub.s32 1, %s4
  %s7 = scalar_select 0, %s6, %s4
  $region1: #{fully_connected.1} parent=0
    #allocation2 [shape = 'u8[8192]{0}', space=vmem, size = 0x2000, scoped, tag = 'input window, operand 0, single buffered']
    #allocation3 [shape = 's32[1]{0}', space=sflag, size = 0x4, scoped, tag = 'scoped memory for fully_connected.1']
    #allocation4 [shape = 's32[1]{0}', space=sflag, size = 0x4, scoped, tag = 'scoped memory for fully_connected.1']
    #allocation5 [shape = 'u8[16384]{0}', space=vmem, size = 0x4000, scoped, tag = 'input window, operand 1, single buffered']
    #allocation6 [shape = 's32[1]{0}', space=sflag, size = 0x4, scoped, tag = 'scoped memory for fully_connected.1']
    #allocation7 [shape = 'u8[8192]{0}', space=vmem, size = 0x2000, scoped, tag = 'output window, operand 0, single buffered']
    %8 = vsyncpa [#allocation3], 0
    %9 = vsyncpa [#allocation6], 0
    %10 = vsyncpa [#allocation4], 0
    // Predicated region
    $region2: #{fully_connected.1} parent=1 // pred_check
      _
    $region3: #{fully_connected.1} parent=1 // pred_check_branch
      %12 = sbr.rel (0) target = $region5
    $region4: #{fully_connected.1} parent=1 // pred_region
      %s14 = ssub.s32 256, 256
      %15 = vsyncadd [#allocation3], %s14
      %s16 = sshll.u32 [#allocation2], 4
      %s17 = int_to_ptr.vmem [resolvable:$true] %s16
      %22 = dma.hbm_to_vmem [thread:$0]  %s0, 256, %s17, [#allocation3], 128, 128, 8
    $region5: #{fully_connected.1} parent=1 // pred_fallthru
      _
    // Predicated region
    $region6: #{fully_connected.1} parent=1 // pred_check
      _
    $region7: #{fully_connected.1} parent=1 // pred_check_branch
      %24 = sbr.rel (0) target = $region9
    $region8: #{fully_connected.1} parent=1 // pred_region
      %s26 = ssub.s32 512, 512
      %27 = vsyncadd [#allocation6], %s26
      %s28 = sshll.u32 [#allocation5], 4
      %s29 = int_to_ptr.vmem [resolvable:$true] %s28
      %34 = dma.hbm_to_vmem [thread:$0]  %s1, 512, %s29, [#allocation6], 128, 128, 8
    $region9: #{fully_connected.1} parent=1 // pred_fallthru
      _
    // Predicated region
    $region10: #{fully_connected.1} parent=1 // pred_check
      _
    $region11: #{fully_connected.1} parent=1 // pred_check_branch
      %36 = sbr.rel (0) target = $region13
    $region12: #{fully_connected.1} parent=1 // pred_region
      _
    $region13: #{fully_connected.1} parent=1 // pred_fallthru
      _
    // Predicated region
    $region14: #{fully_connected.1} parent=1 // pred_check
      _
    $region15: #{fully_connected.1} parent=1 // pred_check_branch
      %38 = sbr.rel (0) target = $region17
    $region16: #{fully_connected.1} parent=1 // pred_region
      %39 = dma.done [#allocation3], 256
    $region17: #{fully_connected.1} parent=1 // pred_fallthru
      _
    // Predicated region
    $region18: #{fully_connected.1} parent=1 // pred_check
      _
    $region19: #{fully_connected.1} parent=1 // pred_check_branch
      %41 = sbr.rel (0) target = $region21
    $region20: #{fully_connected.1} parent=1 // pred_region
      %42 = dma.done [#allocation6], 512
    $region21: #{fully_connected.1} parent=1 // pred_fallthru
      _
    %v43 = vld [vmem:[#allocation2] sm:$0xff]
    %v44 = vld [vmem:[#allocation2 + $0x8] sm:$0xff]
    %v45 = vld [vmem:[#allocation5] sm:$0xff]
    %v46 = vld [vmem:[#allocation5 + $0x8] sm:$0xff]
    %v47 = vld [vmem:[#allocation5 + $0x10] sm:$0xff]
    %v48 = vld [vmem:[#allocation5 + $0x18] sm:$0xff]
    %v49 = vld [vmem:[%s2] sm:$0x1]
    %v51 = vlaneseq
    %v52 = vshrl.u32 %v51, 7
    %v53 = vsub.s32 0, %v52
    %v54 = vrot.slane %v49, %v53
    %vm56 = vcmask 261120
    %v58 = vsel %vm56, %v43, 0
    %v61 = vsel %vm56, %v44, 0
    %63 = vmatprep.subr.mxu0 0.0
    %64 = vmatpush1.msra.mxu0 %v45
    %65 = vmatprep.subr.mxu0 0.0
    %66 = vmatpush1.msra.mxu0 %v46
    %67 = vmatprep.subr.mxu0 0.0
    %68 = vmatpush1.msra.mxu0 %v47
    %69 = vmatprep.subr.mxu0 0.0
    %70 = vmatpush1.msra.mxu0 %v48
    %71 = vmatprep.subr.mxu0 0.0
    %72 = vmatpush1.msra.mxu0 0.0
    %73 = vmatprep.subr.mxu0 0.0
    %74 = vmatpush1.msra.mxu0 0.0
    %75 = vmatprep.subr.mxu0 0.0
    %76 = vmatpush1.msra.mxu0 0.0
    %77 = vmatprep.subr.mxu0 0.0
    %78 = vmatpush1.msra.mxu0 0.0
    %79 = vmatprep.subr.mxu0 0.0
    %80 = vmatpush1.msra.mxu0 0.0
    %81 = vmatprep.subr.mxu0 0.0
    %82 = vmatpush1.msra.mxu0 0.0
    %83 = vmatprep.subr.mxu0 0.0
    %84 = vmatpush1.msra.mxu0 0.0
    %85 = vmatprep.subr.mxu0 0.0
    %86 = vmatpush1.msra.mxu0 0.0
    %87 = vmatprep.subr.mxu0 0.0
    %88 = vmatpush1.msra.mxu0 0.0
    %89 = vmatprep.subr.mxu0 0.0
    %90 = vmatpush1.msra.mxu0 0.0
    %91 = vmatprep.subr.mxu0 0.0
    %92 = vmatpush1.msra.mxu0 0.0
    %93 = vmatprep.subr.mxu0 0.0
    %94 = vmatpush1.msra.mxu0 0.0
    %95 = vmatprep.subr.mxu0 0.0
    %96 = vmatpush1.msra.mxu0 0.0
    %97 = vmatprep.subr.mxu0 0.0
    %98 = vmatpush1.msra.mxu0 0.0
    %99 = vmatprep.subr.mxu0 0.0
    %100 = vmatpush1.msra.mxu0 0.0
    %101 = vmatprep.subr.mxu0 0.0
    %102 = vmatpush1.msra.mxu0 0.0
    %103 = vmatprep.subr.mxu0 0.0
    %104 = vmatpush1.msra.mxu0 0.0
    %105 = vmatprep.subr.mxu0 0.0
    %106 = vmatpush1.msra.mxu0 0.0
    %107 = vmatprep.subr.mxu0 0.0
    %108 = vmatpush1.msra.mxu0 0.0
    %109 = vmatprep.subr.mxu0 0.0
    %110 = vmatpush1.msra.mxu0 0.0
    %111 = vmatprep.subr.mxu0 0.0
    %112 = vmatpush1.msra.mxu0 0.0
    %113 = vmatprep.subr.mxu0 0.0
    %114 = vmatpush1.msra.mxu0 0.0
    %115 = vmatprep.subr.mxu0 0.0
    %116 = vmatpush1.msra.mxu0 0.0
    %117 = vmatprep.subr.mxu0 0.0
    %118 = vmatpush1.msra.mxu0 0.0
    %119 = vmatprep.subr.mxu0 0.0
    %120 = vmatpush1.msra.mxu0 0.0
    %121 = vmatprep.subr.mxu0 0.0
    %122 = vmatpush1.msra.mxu0 0.0
    %123 = vmatprep.subr.mxu0 0.0
    %124 = vmatpush1.msra.mxu0 0.0
    %125 = vmatprep.subr.mxu0 0.0
    %126 = vmatpush1.msra.mxu0 0.0
    %127 = vmatprep.mubr.f32.mxu0 0.0
    %128 = vmatmul.mubr.f32.gmra.mrb[0].mxu0 %v58
    %v129 = vpop.f32.mrb[0].mxu0
    %v130 = vadd.f32 %v54, %v129
    %v131 = vpop.f32.mrb[0].mxu0
    %132 = vmatprep.mubr.f32.mxu0 0.0
    %133 = vmatmul.mubr.f32.gmra.mrb[0].mxu0 %v61
    %v134 = vpop.f32.mrb[0].mxu0
    %v135 = vadd.f32 %v54, %v134
    %v136 = vpop.f32.mrb[0].mxu0
    %137 = vdwg.mxu0
    %138 = vst [vmem:[#allocation7] sm:$0xff] %v130
    %139 = vst [vmem:[#allocation7 + $0x8] sm:$0xff] %v135
    // Predicated region
    $region22: #{fully_connected.1} parent=1 // pred_check
      _
    $region23: #{fully_connected.1} parent=1 // pred_check_branch
      %141 = sbr.rel (0) target = $region25
    $region24: #{fully_connected.1} parent=1 // pred_region
      %s143 = ssub.s32 256, 256
      %144 = vsyncadd [#allocation4], %s143
      %s145 = sshll.u32 [#allocation7], 4
      %s146 = int_to_ptr.vmem [resolvable:$true] %s145
      %151 = dma.vmem_to_hbm [thread:$0]  %s146, 256, %s3, [#allocation4], 128, 128, 8
    $region25: #{fully_connected.1} parent=1 // pred_fallthru
      _
    // Predicated region
    $region26: #{fully_connected.1} parent=1 // pred_check
      _
    $region27: #{fully_connected.1} parent=1 // pred_check_branch
      %153 = sbr.rel (0) target = $region29
    $region28: #{fully_connected.1} parent=1 // pred_region
      %154 = dma.done [#allocation4], 256
    $region29: #{fully_connected.1} parent=1 // pred_fallthru
      _
    %155 = vsyncpa [#allocation3], 1
    %156 = vsyncpa [#allocation6], 1
    %157 = vsyncpa [#allocation4], 1

</llo_original>
